<compile_context>
chip_gen: v7x
topology: tpu7x:2x2x1
jax: 0.10.0
libtpu: 0.0.40
codegen_flags: <defaults>
</compile_context>

<pallas_src>
import functools
import jax
import jax.numpy as jnp
from jax.experimental import pallas as pl
from jax.experimental.pallas import tpu as pltpu


# ----------------------------------------------------------------------------
# Small helpers
# ----------------------------------------------------------------------------
def _round_up(x, m):
    return ((x + m - 1) // m) * m


def _row_align(dtype):
    # sublane packing: f32 -> 8 rows/vreg group, bf16 -> 16, int8/fp8 -> 32
    return {4: 8, 2: 16, 1: 32}.get(jnp.dtype(dtype).itemsize, 8)


def _choose_tile(dim, target, align):
    """Return (tile, padded_dim).

    tile == dim when dim <= target; otherwise a divisor of dim in
    [target//2, target] that is a multiple of `align`; otherwise `target`
    with dim padded up to a multiple of `target`.  tile always divides
    padded_dim.
    """
    if dim <= target:
        return dim, dim
    lo = max(target // 2, align)
    for t in range(target, lo - 1, -align):
        if dim % t == 0:
            return t, dim
    return target, _round_up(dim, target)


def _vmem_budget_bytes():
    """~75% of physical per-core VMEM (≈96 MiB v5e/v6e, ≈48 MiB v7x).

    Falls back to 48 MiB (safe on every generation) if the query is
    unavailable.
    """
    cap = None
    try:
        cap = getattr(pltpu.get_tpu_info(), "vmem_capacity_bytes", None)
    except Exception:
        cap = None
    if not cap:
        cap = 64 * 1024 * 1024
    return int(cap) * 3 // 4


# ----------------------------------------------------------------------------
# Fused (task-embed add) + tiled linear kernel
# ----------------------------------------------------------------------------
def _linear_kernel(*refs, add_task, add_bias, x_cast_dtype):
    """One grid step of: acc += (x [+ t]) @ w ; at k==last: o = acc [+ b].

    refs = (x, [t], w, [b], o, acc)  — t/b present only when fused.
      x: [ts, tk]   t: [1, tk]   w: [tk, tn]   b: [1, tn]
      o: [ts, tn]   acc (f32 scratch): [ts, tn]
    Grid: (M//ts, O//tn, H//tk) — K innermost so the resident accumulator
    pattern is valid.
    """
    acc_ref = refs[-1]
    o_ref = refs[-2]
    x_ref = refs[0]
    i = 1
    t_ref = None
    if add_task:
        t_ref = refs[i]
        i += 1
    w_ref = refs[i]
    i += 1
    b_ref = refs[i] if add_bias else None

    k = pl.program_id(2)

    @pl.when(k == 0)
    def _():
        acc_ref[...] = jnp.zeros_like(acc_ref)

    x = x_ref[...]
    if x_cast_dtype is not None:
        x = x.astype(x_cast_dtype)          # single-pass heads: cast in-kernel
    if add_task:
        x = x + t_ref[...]                  # broadcast [1, tk] over rows
    # Weight is stored [H, O]: last-dim-of-x vs first-dim-of-w contraction
    # feeds the MXU directly (no in-kernel transpose).
    acc_ref[...] += jnp.dot(x, w_ref[...], preferred_element_type=jnp.float32)

    @pl.when(k == pl.num_programs(2) - 1)
    def _():
        out = acc_ref[...]
        if add_bias:
            out = out + b_ref[...]
        o_ref[...] = out.astype(o_ref.dtype)


def fused_linear_pallas(hidden, weight, bias=None, task_embeds=None, *,
                        compute_dtype=None, out_dtype=None,
                        ts_target=1024, tn_target=2048, tk_target=512):
    """out = (hidden (+ task_embeds broadcast over seq)) @ weight (+ bias).

    hidden:      [B, S, H] or [M, H]
    weight:      [H, O]  (pre-transposed; equals x @ W.T for PyTorch W[O, H])
    bias:        [O] or None
    task_embeds: [B, H] or None (3-D hidden only; fused in-kernel)
    Returns [B, S, O] / [M, O] in `out_dtype` (default: hidden dtype).
    """
    is_3d = hidden.ndim == 3
    if is_3d:
        B, S, H = hidden.shape
    else:
        assert task_embeds is None, "pre-add task embeds for 2-D inputs"
        B, S = hidden.shape[0], 1
        H = hidden.shape[-1]
    Hw, O = weight.shape
    assert Hw == H, f"weight must be [H, O]; got {weight.shape} for H={H}"

    out_dtype = jnp.dtype(out_dtype) if out_dtype is not None else jnp.dtype(hidden.dtype)
    cdt = jnp.dtype(compute_dtype) if compute_dtype is not None else jnp.dtype(hidden.dtype)

    add_task = task_embeds is not None
    add_bias = bias is not None
    row_align = _row_align(cdt)

    # --- tile planning against the per-generation VMEM budget ----------------
    Opad0 = _round_up(O, 128)                     # lane-dense output blocks
    if add_task:
        rows0 = _round_up(S, row_align)           # row tiles never span batches
    else:
        rows0 = B * S if is_3d else hidden.shape[0]

    budget = _vmem_budget_bytes()
    w_bytes = cdt.itemsize
    out_bytes = out_dtype.itemsize
    while True:
        ts, rows_p = _choose_tile(rows0, ts_target, row_align)
        tk, Hp = _choose_tile(H, tk_target, 128)
        tn, Op = _choose_tile(Opad0, tn_target, 128)
        n_tiles = Op // tn
        # Single-N-pass heads stream x exactly once: keep it in its original
        # dtype and cast inside the kernel (saves a full HBM cast round trip).
        cast_in_kernel = (jnp.dtype(hidden.dtype) != cdt) and (n_tiles == 1)
        x_bytes = (jnp.dtype(hidden.dtype) if cast_in_kernel else cdt).itemsize
        need = (2 * ts * tk * x_bytes          # x (double-buffered)
                + 2 * tk * tn * w_bytes        # weight
                + 2 * ts * tn * out_bytes      # output
                + ts * tn * 4)                 # f32 accumulator
        if add_task:
            need += 2 * tk * w_bytes
        if add_bias:
            need += 2 * tn * 4
        if need + (4 << 20) <= budget or (
                ts_target <= 256 and tn_target <= 256 and tk_target <= 256):
            break
        if tn_target > 256:
            tn_target //= 2
        elif ts_target > 256:
            ts_target //= 2
        else:
            tk_target //= 2

    # --- operand preparation --------------------------------------------------
    x = hidden if (cast_in_kernel or jnp.dtype(hidden.dtype) == cdt) else hidden.astype(cdt)

    t3 = None
    if add_task:
        Sp = rows_p                               # padded seq length, ts | Sp
        if Sp != S or Hp != H:
            x = jnp.pad(x, ((0, 0), (0, Sp - S), (0, Hp - H)))
        x2 = x.reshape(B * Sp, Hp)
        M = B * Sp
        tiles_per_b = Sp // ts
        t3 = task_embeds if jnp.dtype(task_embeds.dtype) == cdt else task_embeds.astype(cdt)
        t3 = t3.reshape(B, 1, H)
        if Hp != H:
            t3 = jnp.pad(t3, ((0, 0), (0, 0), (0, Hp - H)))
    else:
        x2 = x.reshape(-1, H) if is_3d else x
        M0 = x2.shape[0]
        Mp = rows_p
        if Mp != M0 or Hp != H:
            x2 = jnp.pad(x2, ((0, Mp - M0), (0, Hp - H)))
        M = Mp
        tiles_per_b = 1

    w = weight if jnp.dtype(weight.dtype) == cdt else weight.astype(cdt)
    if Hp != H or Op != O:
        w = jnp.pad(w, ((0, Hp - H), (0, Op - O)))

    bvec = None
    if add_bias:
        bvec = bias.astype(jnp.float32).reshape(1, O)
        if Op != O:
            bvec = jnp.pad(bvec, ((0, 0), (0, Op - O)))

    # --- BlockSpecs / operands (built conditionally: no dummy streams) -------
    in_specs = [pl.BlockSpec((ts, tk), lambda m, n, k: (m, k))]
    operands = [x2]
    if add_task:
        tpb = tiles_per_b
        in_specs.append(pl.BlockSpec((None, 1, tk), lambda m, n, k: (m // tpb, 0, k)))
        operands.append(t3)
    in_specs.append(pl.BlockSpec((tk, tn), lambda m, n, k: (k, n)))
    operands.append(w)
    if add_bias:
        in_specs.append(pl.BlockSpec((1, tn), lambda m, n, k: (0, n)))
        operands.append(bvec)

    grid = (M // ts, Op // tn, Hp // tk)

    vmem_limit = int(min(max(need + (8 << 20), 32 << 20), budget))
    vmem_limit = max(vmem_limit, need + (2 << 20))

    kernel = functools.partial(
        _linear_kernel, add_task=add_task, add_bias=add_bias,
        x_cast_dtype=(cdt if cast_in_kernel else None))

    out = pl.pallas_call(
        kernel,
        out_shape=jax.ShapeDtypeStruct((M, Op), out_dtype),
        grid=grid,
        in_specs=in_specs,
        out_specs=pl.BlockSpec((ts, tn), lambda m, n, k: (m, n)),
        scratch_shapes=[pltpu.VMEM((ts, tn), jnp.float32)],
        compiler_params=pltpu.CompilerParams(
            dimension_semantics=("parallel", "parallel", "arbitrary"),
            vmem_limit_bytes=vmem_limit),
    )(*operands)

    # TODO(synk): if profiling shows exposed DMA at k-step transitions on the
    # weight stream, add pipeline_mode=pl.Buffered(3) to the weight BlockSpec.

    if add_task:
        out = out.reshape(B, Sp, Op)[:, :S, :O]
    elif is_3d:
        out = out[:B * S, :O].reshape(B, S, O)
    else:
        out = out[:hidden.shape[0], :O]
    return out


# ----------------------------------------------------------------------------
# TaskHeads container (parameters in plain JAX, compute in the Pallas kernel)
# ----------------------------------------------------------------------------
class TaskHeadsPallas:
    """Weights are stored pre-transposed as [hidden, out] (= PyTorch W.T)."""

    def __init__(self, hidden_size, task_configs, vocab_size=None,
                 use_task_embeddings=False, task_embedding_dim=64, key=None):
        self.hidden_size = hidden_size
        self.task_configs = task_configs
        self.use_task_embeddings = use_task_embeddings
        self.task_name_to_id = {n: i for i, n in enumerate(task_configs.keys())}
        self.params = {}
        self._wcache = {}                 # (task_name, dtype) -> pre-cast weight
        key = jax.random.PRNGKey(0) if key is None else key

        def init(k, shape, std=0.02):
            return jax.random.normal(k, shape, dtype=jnp.float32) * std

        for task_name, cfg in task_configs.items():
            key, k1, k2 = jax.random.split(key, 3)
            ttype = cfg["task_type"]
            if ttype in ("classification", "token_classification"):
                self.params[task_name] = {
                    "type": ttype,
                    "w": init(k1, (hidden_size, cfg["num_labels"])),   # [H, O]
                    "b": init(k2, (cfg["num_labels"],)),
                }
            elif ttype == "question_answering":
                self.params[task_name] = {
                    "type": ttype,
                    "w": init(k1, (hidden_size, 2)),                   # [H, 2]
                    "b": init(k2, (2,)),
                }
            elif ttype == "generation":
                assert vocab_size is not None
                self.params[task_name] = {
                    "type": ttype,
                    "w": init(k1, (hidden_size, vocab_size)),          # lm_head
                }
            else:
                raise ValueError(f"Unsupported task type: {ttype}")

        if use_task_embeddings:
            key, k1, k2, k3 = jax.random.split(key, 4)
            self.task_embedding = {
                "emb": init(k1, (len(task_configs), task_embedding_dim)),
                "proj_w": init(k2, (task_embedding_dim, hidden_size)),  # [E, H]
                "proj_b": init(k3, (hidden_size,)),
            }

    def _weight(self, task_name, cdt):
        """Per-(task, dtype) cached, pre-cast weight (avoids re-casting the
        vocab projection every call).  Eager-mode cache."""
        key = (task_name, jnp.dtype(cdt).name)
        w = self._wcache.get(key)
        if w is None:
            w = self.params[task_name]["w"]
            if jnp.dtype(w.dtype) != jnp.dtype(cdt):
                w = w.astype(cdt)
            self._wcache[key] = w
        return w

    def __call__(self, hidden_states, task_name, attention_mask=None,
                 task_ids=None, compute_dtype=None):
        cdt = jnp.dtype(compute_dtype) if compute_dtype is not None \
            else jnp.dtype(hidden_states.dtype)

        task_embeds = None
        if self.use_task_embeddings and task_ids is not None:
            te = self.task_embedding
            # Embedding gather is XLA glue ([B] rows); projection runs in
            # Pallas with B folded into the row dimension ([B, E] @ [E, H]).
            emb = jnp.take(te["emb"], task_ids, axis=0)                 # [B, E]
            task_embeds = fused_linear_pallas(
                emb, te["proj_w"], te["proj_b"], compute_dtype=cdt)     # [B, H]

        p = self.params[task_name]
        ttype = p["type"]
        w = self._weight(task_name, cdt)

        if ttype == "classification":
            # use_pooler=True: CLS token pooling.  Adding the task embed to the
            # CLS slice only is equivalent to adding it to every token first.
            cls = hidden_states[:, 0, :]                                # [B, H]
            if task_embeds is not None:
                cls = cls + task_embeds.astype(cls.dtype)
            return fused_linear_pallas(cls, w, p["b"], compute_dtype=cdt)

        if ttype == "token_classification":
            return fused_linear_pallas(hidden_states, w, p["b"], task_embeds,
                                       compute_dtype=cdt)

        if ttype == "generation":
            return fused_linear_pallas(hidden_states, w, None, task_embeds,
                                       compute_dtype=cdt)

        if ttype == "question_answering":
            logits = fused_linear_pallas(hidden_states, w, p["b"], task_embeds,
                                         compute_dtype=cdt)            # [B, S, 2]
            start, end = logits[..., 0], logits[..., 1]
            if attention_mask is not None:
                penalty = (1.0 - attention_mask.astype(start.dtype)) * -10000.0
                start = start + penalty
                end = end + penalty
            return {"start_logits": start, "end_logits": end}

        raise ValueError(f"Unknown task: {task_name}")


# ----------------------------------------------------------------------------
# Pure-JAX reference (for correctness check)
# ----------------------------------------------------------------------------
def reference_forward(model, hidden_states, task_name, attention_mask=None,
                      task_ids=None):
    h = hidden_states
    if model.use_task_embeddings and task_ids is not None:
        te = model.task_embedding
        emb = jnp.take(te["emb"], task_ids, axis=0)
        proj = emb @ te["proj_w"] + te["proj_b"]
        h = h + proj[:, None, :]
    p = model.params[task_name]
    if p["type"] == "classification":
        return h[:, 0, :] @ p["w"] + p["b"]
    if p["type"] == "token_classification":
        return h @ p["w"] + p["b"]
    if p["type"] == "generation":
        return h @ p["w"]
    if p["type"] == "question_answering":
        logits = h @ p["w"] + p["b"]
        start, end = logits[..., 0], logits[..., 1]
        if attention_mask is not None:
            start = start + (1 - attention_mask) * -10000.0
            end = end + (1 - attention_mask) * -10000.0
        return {"start_logits": start, "end_logits": end}
    raise ValueError(p["type"])


# ----------------------------------------------------------------------------
# Demo
# ----------------------------------------------------------------------------
if __name__ == "__main__":
    B, S, H = 2, 8, 32
    VOCAB = 64
    NUM_LABELS = 4
    EMB_DIM = 16

    task_configs = {
        "sentiment": {"task_type": "classification", "num_labels": NUM_LABELS},
        "ner": {"task_type": "token_classification", "num_labels": NUM_LABELS},
        "qa": {"task_type": "question_answering"},
        "summarize": {"task_type": "generation"},
    }

    key = jax.random.PRNGKey(0)
    kh, km, kp = jax.random.split(key, 3)

    model = TaskHeadsPallas(
        hidden_size=H,
        task_configs=task_configs,
        vocab_size=VOCAB,
        use_task_embeddings=True,
        task_embedding_dim=EMB_DIM,
        key=kp,
    )

    hidden_states = jax.random.normal(kh, (B, S, H), dtype=jnp.float32)
    attention_mask = jnp.array(
        [[1] * S, [1] * (S - 3) + [0] * 3], dtype=jnp.float32
    )
    task_ids = jnp.array([0, 2], dtype=jnp.int32)

    ok = True

    def _check(out, ref, atol, rtol):
        good = True
        if isinstance(out, dict):
            for k in out:
                jax.block_until_ready(out[k])
                good &= bool(jnp.allclose(out[k], ref[k], atol=atol, rtol=rtol))
        else:
            jax.block_until_ready(out)
            good &= bool(jnp.allclose(out, ref, atol=atol, rtol=rtol))
        return good

    # f32 path: strict check against the pure-JAX reference.
    for task_name in task_configs:
        out = model(hidden_states, task_name,
                    attention_mask=attention_mask, task_ids=task_ids)
        ref = reference_forward(model, hidden_states, task_name,
                                attention_mask=attention_mask, task_ids=task_ids)
        ok &= _check(out, ref, atol=1e-4, rtol=1e-4)

    # bf16 operand path for the large (lm_head) matmul: f32 accumulation kept,
    # compared against the f32 reference with a looser tolerance.
    out_bf16 = model(hidden_states, "summarize",
                     attention_mask=attention_mask, task_ids=task_ids,
                     compute_dtype=jnp.bfloat16)
    ref_gen = reference_forward(model, hidden_states, "summarize",
                                attention_mask=attention_mask, task_ids=task_ids)
    ok &= _check(out_bf16.astype(jnp.float32), ref_gen, atol=5e-2, rtol=5e-2)

    if ok:
        print("KERNEL_OK")
    else:
        print("MISMATCH")
</pallas_src>

<mosaic_0001>
module attributes {stable_mosaic.version = 11 : i64} {
  func.func @_linear_kernel(%arg0: i32, %arg1: i32, %arg2: i32, %arg3: memref<2x16xf32, #tpu.memory_space<vmem>>, %arg4: memref<16x128xf32, #tpu.memory_space<vmem>>, %arg5: memref<1x128xf32, #tpu.memory_space<vmem>>, %arg6: memref<2x128xf32, #tpu.memory_space<vmem>>, %arg7: memref<2x128xf32, #tpu.memory_space<vmem>>) attributes {dimension_semantics = [#tpu.dimension_semantics<parallel>, #tpu.dimension_semantics<parallel>, #tpu.dimension_semantics<arbitrary>], iteration_bounds = array<i64: 1, 1, 1>, scalar_prefetch = 0 : i64, scratch_operands = 1 : i64, tpu.core_type = #tpu.core_type<tc>, window_params = [{transform_indices = @transform_0, window_bounds = array<i64: 2, 16>}, {transform_indices = @transform_1, window_bounds = array<i64: 16, 128>}, {transform_indices = @transform_2, window_bounds = array<i64: 1, 128>}, {transform_indices = @transform_3, window_bounds = array<i64: 2, 128>}]} {
    %c0_i32 = arith.constant 0 : i32
    %0 = arith.cmpi eq, %arg2, %c0_i32 : i32
    %1 = arith.extui %0 : i1 to i32
    %c0_i32_0 = arith.constant 0 : i32
    %2 = arith.cmpi ne, %1, %c0_i32_0 : i32
    scf.if %2 {
      %cst_10 = arith.constant 0.000000e+00 : f32
      %12 = vector.broadcast %cst_10 : f32 to vector<2x128xf32>
      %c0_11 = arith.constant 0 : index
      %c0_12 = arith.constant 0 : index
      %13 = vector.load %arg7[%c0_11, %c0_12] : memref<2x128xf32, #tpu.memory_space<vmem>>, vector<2x128xf32>
      tpu.vector_store %arg7[%c0_11, %c0_12], %12 {strides = array<i32>} : memref<2x128xf32, #tpu.memory_space<vmem>>, vector<2x128xf32>,
    } else {
    }
    %c0 = arith.constant 0 : index
    %c0_1 = arith.constant 0 : index
    %3 = vector.load %arg3[%c0, %c0_1] : memref<2x16xf32, #tpu.memory_space<vmem>>, vector<2x16xf32>
    %c0_2 = arith.constant 0 : index
    %c0_3 = arith.constant 0 : index
    %4 = vector.load %arg7[%c0_2, %c0_3] : memref<2x128xf32, #tpu.memory_space<vmem>>, vector<2x128xf32>
    %c0_4 = arith.constant 0 : index
    %c0_5 = arith.constant 0 : index
    %5 = vector.load %arg4[%c0_4, %c0_5] : memref<16x128xf32, #tpu.memory_space<vmem>>, vector<16x128xf32>
    %cst = arith.constant dense<0.000000e+00> : vector<2x128xf32>
    %6 = tpu.matmul %3, %5, %cst {dimension_numbers = #tpu.dot_dimension_numbers<[1], [0], [0], [1], [0, 0, 1, 1], [], []>} : vector<2x16xf32>, vector<16x128xf32>, vector<2x128xf32> -> vector<2x128xf32>
    %7 = arith.addf %4, %6 : vector<2x128xf32>
    %c0_6 = arith.constant 0 : index
    %c0_7 = arith.constant 0 : index
    %8 = vector.load %arg7[%c0_6, %c0_7] : memref<2x128xf32, #tpu.memory_space<vmem>>, vector<2x128xf32>
    tpu.vector_store %arg7[%c0_6, %c0_7], %7 {strides = array<i32>} : memref<2x128xf32, #tpu.memory_space<vmem>>, vector<2x128xf32>,
    %c0_i32_8 = arith.constant 0 : i32
    %9 = arith.cmpi eq, %arg2, %c0_i32_8 : i32
    %10 = arith.extui %9 : i1 to i32
    %c0_i32_9 = arith.constant 0 : i32
    %11 = arith.cmpi ne, %10, %c0_i32_9 : i32
    scf.if %11 {
      %c0_10 = arith.constant 0 : index
      %c0_11 = arith.constant 0 : index
      %12 = vector.load %arg7[%c0_10, %c0_11] : memref<2x128xf32, #tpu.memory_space<vmem>>, vector<2x128xf32>
      %c0_12 = arith.constant 0 : index
      %c0_13 = arith.constant 0 : index
      %13 = vector.load %arg5[%c0_12, %c0_13] : memref<1x128xf32, #tpu.memory_space<vmem>>, vector<1x128xf32>
      %14 = vector.broadcast %13 : vector<1x128xf32> to vector<2x128xf32>
      %15 = arith.addf %12, %14 : vector<2x128xf32>
      %c0_14 = arith.constant 0 : index
      %c0_15 = arith.constant 0 : index
      %16 = vector.load %arg6[%c0_14, %c0_15] : memref<2x128xf32, #tpu.memory_space<vmem>>, vector<2x128xf32>
      tpu.vector_store %arg6[%c0_14, %c0_15], %15 {strides = array<i32>} : memref<2x128xf32, #tpu.memory_space<vmem>>, vector<2x128xf32>,
    } else {
    }
    return
  }
  func.func @transform_0(%arg0: i32, %arg1: i32, %arg2: i32) -> (i32, i32) {
    %c0_i32 = arith.constant 0 : i32
    return %arg0, %arg2 : i32, i32
  }
  func.func @transform_1(%arg0: i32, %arg1: i32, %arg2: i32) -> (i32, i32) {
    %c0_i32 = arith.constant 0 : i32
    return %arg2, %arg1 : i32, i32
  }
  func.func @transform_2(%arg0: i32, %arg1: i32, %arg2: i32) -> (i32, i32) {
    %c0_i32 = arith.constant 0 : i32
    %c0_i32_0 = arith.constant 0 : i32
    return %c0_i32, %arg1 : i32, i32
  }
  func.func @transform_3(%arg0: i32, %arg1: i32, %arg2: i32) -> (i32, i32) {
    %c0_i32 = arith.constant 0 : i32
    return %arg0, %arg1 : i32, i32
  }
}

</mosaic_0001>

<llo_original>
// kernel: tpu_custom_call.1
$region0: #{tpu_custom_call.1}
  #allocation0 [shape = 'u32[]', space=smem, size = 0x4, offset = 0x4, fixed_abs, tag = 'smem constant byte address 0x4 - core index']
  #allocation1 [shape = 'u32[144,128]{1,0:T(1,128)}', space=vmem, size = 0x12000, scoped, tag = 'internal scratch']
  #allocation2 [shape = 'f32[2,128]{1,0:T(2,128)}', space=vmem, size = 0x400, scoped, tag = 'scratch operand']
  %s0 = inlined_call_operand.hbm [shape: f32[2,16], index: 0, kind: input, shape index: {}]
  %s1 = inlined_call_operand.hbm [shape: f32[16,128], index: 1, kind: input, shape index: {}]
  %s2 = inlined_call_operand.vmem [shape: f32[1,128], index: 2, kind: input, shape index: {}]
  %s3 = inlined_call_operand.hbm [shape: f32[2,128], index: 3, kind: output, shape index: {}]
  %s4 = sld [smem:[#allocation0]]
  $region38: #{tpu_custom_call.1} parent=0
    _
  %s6 = ssub.s32 1, %s4
  %s7 = scalar_select 0, %s6, %s4
  $region1: #{tpu_custom_call.1} parent=0
    #allocation3 [shape = 'u8[1024]{0}', space=vmem, size = 0x400, scoped, tag = 'input window, operand 0, single buffered']
    #allocation4 [shape = 's32[1]{0}', space=sflag, size = 0x4, scoped, tag = 'scoped memory for tpu_custom_call.1']
    #allocation5 [shape = 's32[1]{0}', space=sflag, size = 0x4, scoped, tag = 'scoped memory for tpu_custom_call.1']
    #allocation6 [shape = 'u8[8192]{0}', space=vmem, size = 0x2000, scoped, tag = 'input window, operand 1, single buffered']
    #allocation7 [shape = 's32[1]{0}', space=sflag, size = 0x4, scoped, tag = 'scoped memory for tpu_custom_call.1']
    #allocation8 [shape = 'u8[1024]{0}', space=vmem, size = 0x400, scoped, tag = 'output window, operand 0, single buffered']
    %8 = vsyncpa [#allocation4], 0
    %9 = vsyncpa [#allocation7], 0
    %10 = vsyncpa [#allocation5], 0
    // Predicated region
    $region2: #{tpu_custom_call.1} parent=1 // pred_check
      _
    $region3: #{tpu_custom_call.1} parent=1 // pred_check_branch
      %12 = sbr.rel (0) target = $region5
    $region4: #{tpu_custom_call.1} parent=1 // pred_region
      %s14 = ssub.s32 32, 32
      %15 = vsyncadd [#allocation4], %s14
      %s17 = sshll.u32 [#allocation3], 4
      %s18 = int_to_ptr.vmem [resolvable:$true] %s17
      %20 = dma.hbm_to_vmem [thread:$0]  %s0, 32, %s18, [#allocation4]
    $region5: #{tpu_custom_call.1} parent=1 // pred_fallthru
      _
    // Predicated region
    $region6: #{tpu_custom_call.1} parent=1 // pred_check
      _
    $region7: #{tpu_custom_call.1} parent=1 // pred_check_branch
      %22 = sbr.rel (0) target = $region9
    $region8: #{tpu_custom_call.1} parent=1 // pred_region
      %s24 = ssub.s32 256, 256
      %25 = vsyncadd [#allocation7], %s24
      %s26 = sshll.u32 [#allocation6], 4
      %s27 = int_to_ptr.vmem [resolvable:$true] %s26
      %32 = dma.hbm_to_vmem [thread:$0]  %s1, 256, %s27, [#allocation7], 128, 128, 8
    $region9: #{tpu_custom_call.1} parent=1 // pred_fallthru
      _
    // Predicated region
    $region10: #{tpu_custom_call.1} parent=1 // pred_check
      _
    $region11: #{tpu_custom_call.1} parent=1 // pred_check_branch
      %34 = sbr.rel (0) target = $region13
    $region12: #{tpu_custom_call.1} parent=1 // pred_region
      _
    $region13: #{tpu_custom_call.1} parent=1 // pred_fallthru
      _
    // Predicated region
    $region14: #{tpu_custom_call.1} parent=1 // pred_check
      _
    $region15: #{tpu_custom_call.1} parent=1 // pred_check_branch
      %36 = sbr.rel (0) target = $region17
    $region16: #{tpu_custom_call.1} parent=1 // pred_region
      %37 = dma.done [#allocation4], 32
    $region17: #{tpu_custom_call.1} parent=1 // pred_fallthru
      _
    // Predicated region
    $region18: #{tpu_custom_call.1} parent=1 // pred_check
      _
    $region19: #{tpu_custom_call.1} parent=1 // pred_check_branch
      %39 = sbr.rel (0) target = $region21
    $region20: #{tpu_custom_call.1} parent=1 // pred_region
      %40 = dma.done [#allocation7], 256
    $region21: #{tpu_custom_call.1} parent=1 // pred_fallthru
      _
    %p41 = scmp.eq.s32.totalorder 0, 0
    // Predicated region
    $region22: #{tpu_custom_call.1} parent=1 // pred_check
      %p42 = pneg %p41
    $region23: #{tpu_custom_call.1} parent=1 // pred_check_branch
      %44 = sbr.rel (%p42) target = $region25
    $region24: #{tpu_custom_call.1} parent=1 // pred_region
      %45 = vst [vmem:[#allocation2] sm:$0x3] 0.0
    $region25: #{tpu_custom_call.1} parent=1 // pred_fallthru
      _
    %v46 = vld [vmem:[#allocation3] sm:$0x3]
    %v47 = vld [vmem:[#allocation2] sm:$0x3]
    %v48 = vld [vmem:[#allocation6] sm:$0xff]
    %v49 = vld [vmem:[#allocation6 + $0x8] sm:$0xff]
    %vm50 = vcmask 130048
    %v52 = vsel %vm50, %v46, 0
    %54 = vmatprep.subr.mxu0 0.0
    %55 = vmatpush1.msra.mxu0 %v48
    %56 = vmatprep.subr.mxu0 0.0
    %57 = vmatpush1.msra.mxu0 %v49
    %58 = vmatprep.subr.mxu0 0.0
    %59 = vmatpush1.msra.mxu0 0.0
    %60 = vmatprep.subr.mxu0 0.0
    %61 = vmatpush1.msra.mxu0 0.0
    %62 = vmatprep.subr.mxu0 0.0
    %63 = vmatpush1.msra.mxu0 0.0
    %64 = vmatprep.subr.mxu0 0.0
    %65 = vmatpush1.msra.mxu0 0.0
    %66 = vmatprep.subr.mxu0 0.0
    %67 = vmatpush1.msra.mxu0 0.0
    %68 = vmatprep.subr.mxu0 0.0
    %69 = vmatpush1.msra.mxu0 0.0
    %70 = vmatprep.subr.mxu0 0.0
    %71 = vmatpush1.msra.mxu0 0.0
    %72 = vmatprep.subr.mxu0 0.0
    %73 = vmatpush1.msra.mxu0 0.0
    %74 = vmatprep.subr.mxu0 0.0
    %75 = vmatpush1.msra.mxu0 0.0
    %76 = vmatprep.subr.mxu0 0.0
    %77 = vmatpush1.msra.mxu0 0.0
    %78 = vmatprep.subr.mxu0 0.0
    %79 = vmatpush1.msra.mxu0 0.0
    %80 = vmatprep.subr.mxu0 0.0
    %81 = vmatpush1.msra.mxu0 0.0
    %82 = vmatprep.subr.mxu0 0.0
    %83 = vmatpush1.msra.mxu0 0.0
    %84 = vmatprep.subr.mxu0 0.0
    %85 = vmatpush1.msra.mxu0 0.0
    %86 = vmatprep.subr.mxu0 0.0
    %87 = vmatpush1.msra.mxu0 0.0
    %88 = vmatprep.subr.mxu0 0.0
    %89 = vmatpush1.msra.mxu0 0.0
    %90 = vmatprep.subr.mxu0 0.0
    %91 = vmatpush1.msra.mxu0 0.0
    %92 = vmatprep.subr.mxu0 0.0
    %93 = vmatpush1.msra.mxu0 0.0
    %94 = vmatprep.subr.mxu0 0.0
    %95 = vmatpush1.msra.mxu0 0.0
    %96 = vmatprep.subr.mxu0 0.0
    %97 = vmatpush1.msra.mxu0 0.0
    %98 = vmatprep.subr.mxu0 0.0
    %99 = vmatpush1.msra.mxu0 0.0
    %100 = vmatprep.subr.mxu0 0.0
    %101 = vmatpush1.msra.mxu0 0.0
    %102 = vmatprep.subr.mxu0 0.0
    %103 = vmatpush1.msra.mxu0 0.0
    %104 = vmatprep.subr.mxu0 0.0
    %105 = vmatpush1.msra.mxu0 0.0
    %106 = vmatprep.subr.mxu0 0.0
    %107 = vmatpush1.msra.mxu0 0.0
    %108 = vmatprep.subr.mxu0 0.0
    %109 = vmatpush1.msra.mxu0 0.0
    %110 = vmatprep.subr.mxu0 0.0
    %111 = vmatpush1.msra.mxu0 0.0
    %112 = vmatprep.subr.mxu0 0.0
    %113 = vmatpush1.msra.mxu0 0.0
    %114 = vmatprep.subr.mxu0 0.0
    %115 = vmatpush1.msra.mxu0 0.0
    %116 = vmatprep.subr.mxu0 0.0
    %117 = vmatpush1.msra.mxu0 0.0
    %118 = vmatprep.mubr.f32.mxu0 0.0
    %119 = vmatmul.mubr.f32.gmra.mrb[0].mxu0 %v52
    %v120 = vpop.f32.mrb[0].mxu0
    %v121 = vadd.f32 0.0, %v120
    %v122 = vpop.f32.mrb[0].mxu0
    %123 = vdwg.mxu0
    %v124 = vadd.f32 %v47, %v121
    %125 = vst [vmem:[#allocation2] sm:$0x3] %v124
    // Predicated region
    $region26: #{tpu_custom_call.1} parent=1 // pred_check
      %p126 = pneg %p41
    $region27: #{tpu_custom_call.1} parent=1 // pred_check_branch
      %128 = sbr.rel (%p126) target = $region29
    $region28: #{tpu_custom_call.1} parent=1 // pred_region
      %v129 = vld [vmem:[#allocation2] sm:$0x3]
      %v130 = vld [vmem:[%s2] sm:$0x1]
      %v132 = vlaneseq
      %v133 = vshrl.u32 %v132, 7
      %v134 = vsub.s32 0, %v133
      %v135 = vrot.slane %v130, %v134
      %v137 = vadd.f32 %v129, %v135
      %138 = vst [vmem:[#allocation8] sm:$0x3] %v137
    $region29: #{tpu_custom_call.1} parent=1 // pred_fallthru
      _
    // Predicated region
    $region30: #{tpu_custom_call.1} parent=1 // pred_check
      _
    $region31: #{tpu_custom_call.1} parent=1 // pred_check_branch
      %140 = sbr.rel (0) target = $region33
    $region32: #{tpu_custom_call.1} parent=1 // pred_region
      %s142 = ssub.s32 32, 32
      %143 = vsyncadd [#allocation5], %s142
      %s145 = sshll.u32 [#allocation8], 4
      %s146 = int_to_ptr.vmem [resolvable:$true] %s145
      %148 = dma.vmem_to_hbm [thread:$0]  %s146, 32, %s3, [#allocation5]
    $region33: #{tpu_custom_call.1} parent=1 // pred_fallthru
      _
    // Predicated region
    $region34: #{tpu_custom_call.1} parent=1 // pred_check
      _
    $region35: #{tpu_custom_call.1} parent=1 // pred_check_branch
      %150 = sbr.rel (0) target = $region37
    $region36: #{tpu_custom_call.1} parent=1 // pred_region
      %151 = dma.done [#allocation5], 32
    $region37: #{tpu_custom_call.1} parent=1 // pred_fallthru
      _
    %152 = vsyncpa [#allocation4], 1
    %153 = vsyncpa [#allocation7], 1
    %154 = vsyncpa [#allocation5], 1

</llo_original>
